<compile_context>
chip_gen: v5e
topology: v5e:2x2
jax: 0.10.0
libtpu: 0.0.40
codegen_flags: <defaults>
</compile_context>

<pallas_src>
import functools

import jax
import jax.numpy as jnp
from jax.experimental import pallas as pl
from jax.experimental.pallas import tpu as pltpu

_SPLIT = 2  # megacore split of the pixel-tile axis (no-op on 1-TC chips)


def _combined_loss_kernel(logits_ref, labels_ref, stats_ref, *, hw, tile, t_half):
    s = pl.program_id(0)   # megacore split
    n = pl.program_id(1)   # image
    t = pl.program_id(2)   # pixel tile within split

    @pl.when(jnp.logical_and(n == 0, t == 0))
    def _():
        stats_ref[...] = jnp.zeros_like(stats_ref)

    x = logits_ref[0].astype(jnp.float32)     # (C, TILE)  channels on sublanes
    labels = labels_ref[0]                    # (1, TILE)  int32
    C = x.shape[0]

    # In-kernel one-hot: classes on sublanes, pixels on lanes.
    class_iota = jax.lax.broadcasted_iota(jnp.int32, (C, tile), 0)
    onehot = (class_iota == labels).astype(jnp.float32)          # (C, TILE)

    # In-kernel validity mask for the padded tail of the pixel axis.
    col = jax.lax.broadcasted_iota(jnp.int32, (1, tile), 1)
    base = (s * t_half + t) * tile
    valid = ((base + col) < hw).astype(jnp.float32)              # (1, TILE)

    # Stable softmax / log-softmax over the channel (sublane) axis.
    m = jnp.max(x, axis=0, keepdims=True)                        # (1, TILE)
    e = jnp.exp(x - m)                                           # (C, TILE)
    denom = jnp.sum(e, axis=0, keepdims=True)                    # (1, TILE)
    prob = e * pl.reciprocal(denom, approx=True)                 # (C, TILE)

    x_t = jnp.sum(x * onehot, axis=0, keepdims=True)             # (1, TILE)
    logp_t = x_t - m - jnp.log(denom)                            # exact log p_t
    p_t = jnp.exp(logp_t)                                        # (1, TILE)
    one_m = 1.0 - p_t
    focal_pix = -(one_m * one_m) * logp_t                        # gamma = 2, unweighted

    onehot_v = onehot * valid                                    # (C, TILE)

    # Per-class sufficient statistics (reduce over the pixel/lane axis).
    inter = jnp.sum(onehot_v * p_t, axis=1, keepdims=True)       # (C, 1) Σ p_t over class c
    psum = jnp.sum(prob * valid, axis=1, keepdims=True)          # (C, 1) Σ prob_c
    tsum = jnp.sum(onehot_v, axis=1, keepdims=True)              # (C, 1) pixel count of class c
    focal_c = jnp.sum(onehot_v * focal_pix, axis=1, keepdims=True)  # (C, 1)

    stats_ref[0, :, 0:1] += inter
    stats_ref[0, :, 1:2] += psum
    stats_ref[0, :, 2:3] += tsum
    stats_ref[0, :, 3:4] += focal_c


@functools.partial(jax.jit, static_argnames=("alpha", "smooth", "tile"))
def combined_loss(predict, target, weight=None, *, alpha=10.0, smooth=1e-5,
                  tile=2048):
    """predict: [N, C, H, W] float logits, target: [N, H, W] int labels."""
    N, C, H, W = predict.shape
    HW = H * W

    # Native layout, no transpose: pixels on lanes, channels on sublanes.
    logits = predict.reshape(N, C, HW)                 # free reshape of NCHW
    labels = target.astype(jnp.int32).reshape(N, 1, HW)

    # Pixel tile on the lane axis (big tiles amortize per-step overhead).
    tile_hw = min(tile, max(128, pl.cdiv(pl.cdiv(HW, _SPLIT), 128) * 128))
    n_tiles = pl.cdiv(HW, tile_hw)
    n_tiles = pl.cdiv(n_tiles, _SPLIT) * _SPLIT        # divisible by the megacore split
    hw_pad = n_tiles * tile_hw
    t_half = n_tiles // _SPLIT

    if hw_pad != HW:   # only the final partial tile needs padding; masked in-kernel
        logits = jnp.pad(logits, ((0, 0), (0, 0), (0, hw_pad - HW)))
        labels = jnp.pad(labels, ((0, 0), (0, 0), (0, hw_pad - HW)))

    kernel = functools.partial(_combined_loss_kernel,
                               hw=HW, tile=tile_hw, t_half=t_half)

    stats = pl.pallas_call(
        kernel,
        out_shape=jax.ShapeDtypeStruct((_SPLIT, C, 128), jnp.float32),
        grid_spec=pltpu.PrefetchScalarGridSpec(
            num_scalar_prefetch=0,
            grid=(_SPLIT, N, t_half),
            in_specs=[
                pl.BlockSpec((1, C, tile_hw),
                             lambda s, n, t: (n, 0, s * t_half + t)),
                pl.BlockSpec((1, 1, tile_hw),
                             lambda s, n, t: (n, 0, s * t_half + t)),
            ],
            out_specs=pl.BlockSpec((1, C, 128), lambda s, n, t: (s, 0, 0)),
        ),
        compiler_params=pltpu.CompilerParams(
            dimension_semantics=("parallel", "arbitrary", "arbitrary"),
            vmem_limit_bytes=32 * 1024 * 1024),
    )(logits, labels)

    # --- tiny scalar glue (class weights applied here; nothing extra streamed) ---
    stats = jnp.sum(stats, axis=0)                     # (C, 128), sum megacore halves
    inter, psum, tsum, focal_c = stats[:, 0], stats[:, 1], stats[:, 2], stats[:, 3]

    if weight is None:
        wvec = jnp.ones((C,), jnp.float32)
    else:
        wvec = jnp.asarray(weight, jnp.float32).reshape(C)

    dice_per_class = (2.0 * inter + smooth) / (psum + tsum + smooth)
    dice = jnp.sum((wvec / jnp.sum(wvec)) * dice_per_class)   # MultiDiceLoss (dice coeff)
    focal = jnp.sum(wvec * focal_c) / jnp.sum(wvec * tsum)    # FocalLoss (weighted mean)
    loss = alpha * focal - jnp.log(dice)                      # CombinedLoss
    return loss                                               # .mean() of a scalar


def _reference(predict, target, weight=None, alpha=10.0, smooth=1e-5):
    """Pure-JAX reference for sanity checking."""
    N, C, H, W = predict.shape
    logits = jnp.transpose(predict, (0, 2, 3, 1)).reshape(-1, C).astype(jnp.float32)
    onehot = jax.nn.one_hot(target.reshape(-1), C, dtype=jnp.float32)
    prob = jax.nn.softmax(logits, axis=-1)
    wvec = (jnp.ones((C,), jnp.float32) if weight is None
            else jnp.asarray(weight, jnp.float32))
    p_t = jnp.sum(prob * onehot, axis=-1)
    w_t = jnp.sum(wvec[None, :] * onehot, axis=-1)
    focal = jnp.sum(-w_t * (1 - p_t) ** 2 * jnp.log(p_t + 1e-12)) / jnp.sum(w_t)
    inter = jnp.sum(prob * onehot, axis=0)
    dice_c = (2 * inter + smooth) / (jnp.sum(prob, 0) + jnp.sum(onehot, 0) + smooth)
    dice = jnp.sum((wvec / jnp.sum(wvec)) * dice_c)
    return alpha * focal - jnp.log(dice)


if __name__ == "__main__":
    key = jax.random.PRNGKey(0)
    k1, k2 = jax.random.split(key)
    N, C, H, W = 2, 4, 16, 16
    predict = jax.random.normal(k1, (N, C, H, W), dtype=jnp.float32)
    target = jax.random.randint(k2, (N, H, W), 0, C, dtype=jnp.int32)

    # Unweighted.
    loss = jax.block_until_ready(combined_loss(predict, target, alpha=10.0))
    ref = _reference(predict, target, alpha=10.0)
    # Tolerance 1e-3: approx EUP reciprocal in the softmax + different accumulation order.
    assert jnp.allclose(loss, ref, rtol=1e-3, atol=1e-3), (loss, ref)

    # With class weights (weight combine happens in the scalar glue).
    wts = jnp.array([1.0, 2.0, 0.5, 1.5], jnp.float32)
    loss_w = jax.block_until_ready(combined_loss(predict, target, wts, alpha=10.0))
    ref_w = _reference(predict, target, wts, alpha=10.0)
    assert jnp.allclose(loss_w, ref_w, rtol=1e-3, atol=1e-3), (loss_w, ref_w)

    print("KERNEL_OK")
</pallas_src>

<mosaic_0001>
module attributes {stable_mosaic.version = 11 : i64} {
  func.func @_combined_loss_kernel(%arg0: i32, %arg1: i32, %arg2: i32, %arg3: memref<1x4x128xf32, #tpu.memory_space<vmem>>, %arg4: memref<1x1x128xi32, #tpu.memory_space<vmem>>, %arg5: memref<1x4x128xf32, #tpu.memory_space<vmem>>) attributes {dimension_semantics = [#tpu.dimension_semantics<parallel>, #tpu.dimension_semantics<arbitrary>, #tpu.dimension_semantics<arbitrary>], iteration_bounds = array<i64: 2, 2, 1>, scalar_prefetch = 0 : i64, scratch_operands = 0 : i64, tpu.core_type = #tpu.core_type<tc>, window_params = [{transform_indices = @transform_0, window_bounds = array<i64: 1, 4, 128>}, {transform_indices = @transform_1, window_bounds = array<i64: 1, 1, 128>}, {transform_indices = @transform_2, window_bounds = array<i64: 1, 4, 128>}]} {
    %c0_i32 = arith.constant 0 : i32
    %0 = arith.cmpi eq, %arg1, %c0_i32 : i32
    %c0_i32_0 = arith.constant 0 : i32
    %1 = arith.cmpi eq, %arg2, %c0_i32_0 : i32
    %2 = arith.andi %0, %1 : i1
    %3 = arith.extui %2 : i1 to i32
    %c0_i32_1 = arith.constant 0 : i32
    %4 = arith.cmpi ne, %3, %c0_i32_1 : i32
    scf.if %4 {
      %cst_36 = arith.constant 0.000000e+00 : f32
      %87 = vector.broadcast %cst_36 : f32 to vector<1x4x128xf32>
      %c0_37 = arith.constant 0 : index
      %c0_38 = arith.constant 0 : index
      %c0_39 = arith.constant 0 : index
      %88 = vector.load %arg5[%c0_37, %c0_38, %c0_39] : memref<1x4x128xf32, #tpu.memory_space<vmem>>, vector<1x4x128xf32>
      tpu.vector_store %arg5[%c0_37, %c0_38, %c0_39], %87 {strides = array<i32>} : memref<1x4x128xf32, #tpu.memory_space<vmem>>, vector<1x4x128xf32>,
    } else {
    }
    %c0 = arith.constant 0 : index
    %c0_2 = arith.constant 0 : index
    %c0_3 = arith.constant 0 : index
    %5 = vector.load %arg3[%c0, %c0_2, %c0_3] : memref<1x4x128xf32, #tpu.memory_space<vmem>>, vector<1x4x128xf32>
    %6 = vector.shape_cast %5 : vector<1x4x128xf32> to vector<4x128xf32>
    %c0_4 = arith.constant 0 : index
    %c0_5 = arith.constant 0 : index
    %c0_6 = arith.constant 0 : index
    %7 = vector.load %arg4[%c0_4, %c0_5, %c0_6] : memref<1x1x128xi32, #tpu.memory_space<vmem>>, vector<1x1x128xi32>
    %8 = vector.shape_cast %7 : vector<1x1x128xi32> to vector<1x128xi32>
    %9 = tpu.iota {dimensions = array<i32: 0>} : vector<4x128xi32>
    %10 = vector.broadcast %8 : vector<1x128xi32> to vector<4x128xi32>
    %11 = arith.cmpi eq, %9, %10 : vector<4x128xi32>
    %12 = arith.extui %11 : vector<4x128xi1> to vector<4x128xi32>
    %13 = arith.sitofp %12 : vector<4x128xi32> to vector<4x128xf32>
    %14 = tpu.iota {dimensions = array<i32: 1>} : vector<1x128xi32>
    %c1_i32 = arith.constant 1 : i32
    %15 = arith.muli %arg0, %c1_i32 : i32
    %16 = arith.addi %15, %arg2 : i32
    %c128_i32 = arith.constant 128 : i32
    %17 = arith.muli %16, %c128_i32 : i32
    %18 = vector.broadcast %17 : i32 to vector<1x128xi32>
    %19 = arith.addi %18, %14 : vector<1x128xi32>
    %c256_i32 = arith.constant 256 : i32
    %20 = vector.broadcast %c256_i32 : i32 to vector<1x128xi32>
    %21 = arith.cmpi slt, %19, %20 : vector<1x128xi32>
    %22 = arith.extui %21 : vector<1x128xi1> to vector<1x128xi32>
    %23 = arith.sitofp %22 : vector<1x128xi32> to vector<1x128xf32>
    %cst = arith.constant dense<0xFF800000> : vector<128xf32>
    %24 = vector.multi_reduction <maximumf>, %6, %cst [0] : vector<4x128xf32> to vector<128xf32>
    %25 = vector.shape_cast %24 : vector<128xf32> to vector<1x128xf32>
    %26 = vector.broadcast %25 : vector<1x128xf32> to vector<4x128xf32>
    %27 = arith.subf %6, %26 : vector<4x128xf32>
    %28 = math.exp %27 : vector<4x128xf32>
    %cst_7 = arith.constant dense<0.000000e+00> : vector<128xf32>
    %29 = vector.multi_reduction <add>, %28, %cst_7 [0] : vector<4x128xf32> to vector<128xf32>
    %30 = vector.shape_cast %29 : vector<128xf32> to vector<1x128xf32>
    %31 = tpu.reciprocal %30 {approx = true} : vector<1x128xf32> -> vector<1x128xf32>
    %32 = vector.broadcast %31 : vector<1x128xf32> to vector<4x128xf32>
    %33 = arith.mulf %28, %32 : vector<4x128xf32>
    %34 = arith.mulf %6, %13 : vector<4x128xf32>
    %cst_8 = arith.constant dense<0.000000e+00> : vector<128xf32>
    %35 = vector.multi_reduction <add>, %34, %cst_8 [0] : vector<4x128xf32> to vector<128xf32>
    %36 = vector.shape_cast %35 : vector<128xf32> to vector<1x128xf32>
    %37 = arith.subf %36, %25 : vector<1x128xf32>
    %38 = math.log %30 : vector<1x128xf32>
    %39 = arith.subf %37, %38 : vector<1x128xf32>
    %40 = math.exp %39 : vector<1x128xf32>
    %cst_9 = arith.constant 1.000000e+00 : f32
    %41 = vector.broadcast %cst_9 : f32 to vector<1x128xf32>
    %42 = arith.subf %41, %40 : vector<1x128xf32>
    %43 = arith.mulf %42, %42 : vector<1x128xf32>
    %cst_10 = arith.constant 0.000000e+00 : f32
    %44 = vector.broadcast %cst_10 : f32 to vector<1x128xf32>
    %45 = arith.subf %44, %43 : vector<1x128xf32>
    %46 = arith.mulf %45, %39 : vector<1x128xf32>
    %47 = vector.broadcast %23 : vector<1x128xf32> to vector<4x128xf32>
    %48 = arith.mulf %13, %47 : vector<4x128xf32>
    %49 = vector.broadcast %40 : vector<1x128xf32> to vector<4x128xf32>
    %50 = arith.mulf %48, %49 : vector<4x128xf32>
    %cst_11 = arith.constant dense<0.000000e+00> : vector<4xf32>
    %51 = vector.multi_reduction <add>, %50, %cst_11 [1] : vector<4x128xf32> to vector<4xf32>
    %52 = vector.shape_cast %51 : vector<4xf32> to vector<4x1xf32>
    %53 = vector.broadcast %23 : vector<1x128xf32> to vector<4x128xf32>
    %54 = arith.mulf %33, %53 : vector<4x128xf32>
    %cst_12 = arith.constant dense<0.000000e+00> : vector<4xf32>
    %55 = vector.multi_reduction <add>, %54, %cst_12 [1] : vector<4x128xf32> to vector<4xf32>
    %56 = vector.shape_cast %55 : vector<4xf32> to vector<4x1xf32>
    %cst_13 = arith.constant dense<0.000000e+00> : vector<4xf32>
    %57 = vector.multi_reduction <add>, %48, %cst_13 [1] : vector<4x128xf32> to vector<4xf32>
    %58 = vector.shape_cast %57 : vector<4xf32> to vector<4x1xf32>
    %59 = vector.broadcast %46 : vector<1x128xf32> to vector<4x128xf32>
    %60 = arith.mulf %48, %59 : vector<4x128xf32>
    %cst_14 = arith.constant dense<0.000000e+00> : vector<4xf32>
    %61 = vector.multi_reduction <add>, %60, %cst_14 [1] : vector<4x128xf32> to vector<4xf32>
    %62 = vector.shape_cast %61 : vector<4xf32> to vector<4x1xf32>
    %c0_15 = arith.constant 0 : index
    %c0_16 = arith.constant 0 : index
    %c0_17 = arith.constant 0 : index
    %63 = vector.load %arg5[%c0_15, %c0_16, %c0_17] : memref<1x4x128xf32, #tpu.memory_space<vmem>>, vector<1x4x1xf32>
    %64 = vector.shape_cast %63 : vector<1x4x1xf32> to vector<4x1xf32>
    %65 = arith.addf %64, %52 : vector<4x1xf32>
    %c0_18 = arith.constant 0 : index
    %c0_19 = arith.constant 0 : index
    %c0_20 = arith.constant 0 : index
    %66 = vector.load %arg5[%c0_18, %c0_19, %c0_20] : memref<1x4x128xf32, #tpu.memory_space<vmem>>, vector<1x4x1xf32>
    %67 = vector.shape_cast %66 : vector<1x4x1xf32> to vector<4x1xf32>
    %68 = vector.shape_cast %65 : vector<4x1xf32> to vector<1x4x1xf32>
    tpu.vector_store %arg5[%c0_18, %c0_19, %c0_20], %68 {strides = array<i32>} : memref<1x4x128xf32, #tpu.memory_space<vmem>>, vector<1x4x1xf32>,
    %c0_21 = arith.constant 0 : index
    %c0_22 = arith.constant 0 : index
    %c1 = arith.constant 1 : index
    %69 = vector.load %arg5[%c0_21, %c0_22, %c1] : memref<1x4x128xf32, #tpu.memory_space<vmem>>, vector<1x4x1xf32>
    %70 = vector.shape_cast %69 : vector<1x4x1xf32> to vector<4x1xf32>
    %71 = arith.addf %70, %56 : vector<4x1xf32>
    %c0_23 = arith.constant 0 : index
    %c0_24 = arith.constant 0 : index
    %c1_25 = arith.constant 1 : index
    %72 = vector.load %arg5[%c0_23, %c0_24, %c1_25] : memref<1x4x128xf32, #tpu.memory_space<vmem>>, vector<1x4x1xf32>
    %73 = vector.shape_cast %72 : vector<1x4x1xf32> to vector<4x1xf32>
    %74 = vector.shape_cast %71 : vector<4x1xf32> to vector<1x4x1xf32>
    tpu.vector_store %arg5[%c0_23, %c0_24, %c1_25], %74 {strides = array<i32>} : memref<1x4x128xf32, #tpu.memory_space<vmem>>, vector<1x4x1xf32>,
    %c0_26 = arith.constant 0 : index
    %c0_27 = arith.constant 0 : index
    %c2 = arith.constant 2 : index
    %75 = vector.load %arg5[%c0_26, %c0_27, %c2] : memref<1x4x128xf32, #tpu.memory_space<vmem>>, vector<1x4x1xf32>
    %76 = vector.shape_cast %75 : vector<1x4x1xf32> to vector<4x1xf32>
    %77 = arith.addf %76, %58 : vector<4x1xf32>
    %c0_28 = arith.constant 0 : index
    %c0_29 = arith.constant 0 : index
    %c2_30 = arith.constant 2 : index
    %78 = vector.load %arg5[%c0_28, %c0_29, %c2_30] : memref<1x4x128xf32, #tpu.memory_space<vmem>>, vector<1x4x1xf32>
    %79 = vector.shape_cast %78 : vector<1x4x1xf32> to vector<4x1xf32>
    %80 = vector.shape_cast %77 : vector<4x1xf32> to vector<1x4x1xf32>
    tpu.vector_store %arg5[%c0_28, %c0_29, %c2_30], %80 {strides = array<i32>} : memref<1x4x128xf32, #tpu.memory_space<vmem>>, vector<1x4x1xf32>,
    %c0_31 = arith.constant 0 : index
    %c0_32 = arith.constant 0 : index
    %c3 = arith.constant 3 : index
    %81 = vector.load %arg5[%c0_31, %c0_32, %c3] : memref<1x4x128xf32, #tpu.memory_space<vmem>>, vector<1x4x1xf32>
    %82 = vector.shape_cast %81 : vector<1x4x1xf32> to vector<4x1xf32>
    %83 = arith.addf %82, %62 : vector<4x1xf32>
    %c0_33 = arith.constant 0 : index
    %c0_34 = arith.constant 0 : index
    %c3_35 = arith.constant 3 : index
    %84 = vector.load %arg5[%c0_33, %c0_34, %c3_35] : memref<1x4x128xf32, #tpu.memory_space<vmem>>, vector<1x4x1xf32>
    %85 = vector.shape_cast %84 : vector<1x4x1xf32> to vector<4x1xf32>
    %86 = vector.shape_cast %83 : vector<4x1xf32> to vector<1x4x1xf32>
    tpu.vector_store %arg5[%c0_33, %c0_34, %c3_35], %86 {strides = array<i32>} : memref<1x4x128xf32, #tpu.memory_space<vmem>>, vector<1x4x1xf32>,
    return
  }
  func.func @transform_0(%arg0: i32, %arg1: i32, %arg2: i32) -> (i32, i32, i32) {
    %c1_i32 = arith.constant 1 : i32
    %0 = arith.muli %arg0, %c1_i32 : i32
    %1 = arith.addi %0, %arg2 : i32
    %c0_i32 = arith.constant 0 : i32
    %c0_i32_0 = arith.constant 0 : i32
    return %arg1, %c0_i32, %1 : i32, i32, i32
  }
  func.func @transform_1(%arg0: i32, %arg1: i32, %arg2: i32) -> (i32, i32, i32) {
    %c1_i32 = arith.constant 1 : i32
    %0 = arith.muli %arg0, %c1_i32 : i32
    %1 = arith.addi %0, %arg2 : i32
    %c0_i32 = arith.constant 0 : i32
    %c0_i32_0 = arith.constant 0 : i32
    return %arg1, %c0_i32, %1 : i32, i32, i32
  }
  func.func @transform_2(%arg0: i32, %arg1: i32, %arg2: i32) -> (i32, i32, i32) {
    %c0_i32 = arith.constant 0 : i32
    %c0_i32_0 = arith.constant 0 : i32
    %c0_i32_1 = arith.constant 0 : i32
    return %arg0, %c0_i32, %c0_i32_0 : i32, i32, i32
  }
}

</mosaic_0001>

<llo_original>
// kernel: combined_loss.1
$region0: #{combined_loss.1}
  #allocation0 [shape = 'u32[]', space=smem, size = 0x4, offset = 0x4, fixed_abs, tag = 'smem constant byte address 0x4 - core index']
  #allocation1 [shape = 'u32[72,128]{1,0:T(1,128)}', space=vmem, size = 0x9000, scoped, tag = 'internal scratch']
  %s0 = inlined_call_operand.vmem [shape: f32[2,4,256], index: 0, kind: input, shape index: {}]
  %s1 = inlined_call_operand.vmem [shape: s32[2,1,256], index: 1, kind: input, shape index: {}]
  %s2 = inlined_call_operand.vmem [shape: f32[2,4,128], index: 2, kind: output, shape index: {}]
  %s3 = sld [smem:[#allocation0]]
  $region45: #{combined_loss.1} parent=0
    _
  %s5 = ssub.s32 1, %s3
  %s6 = scalar_select 0, %s5, %s3
  loop: start=0, step=1, limit=6
  $region2: #{combined_loss.1} parent=0 // loop_pre_header
    _
  $region3: #{combined_loss.1} parent=0 // loop_header
    %s8 = sphi 0, %s12
    %p9 = scmp.ge.s32.totalorder %s8, 6
    %s15 = sphi 0, %s34
    %s16 = sphi 0, %s30
    %s17 = sphi 0, %s26
    %s18 = sphi 0, %s15
    %s19 = sphi 0, %s16
    %s20 = sphi 0, %s17
    %s21 = sphi 0, %s18
    %s22 = sphi 0, %s19
    %s23 = sphi 0, %s20
    %s41 = sphi 0, %s43
    %s44 = sphi 0, %s41
    %s45 = sphi 0, %s44
    %s61 = sphi 0, %s45
    %s71 = sphi 0, %s73
    %s74 = sphi 0, %s71
    %s75 = sphi 0, %s74
    %s91 = sphi 0, %s75
    %s97 = sphi 0, %s99
    %s100 = sphi 0, %s97
    %s101 = sphi 0, %s100
    %s117 = sphi 0, %s101
  $region4: #{combined_loss.1} parent=0 // loop_header_branch
    %11 = sbr.rel (%p9) target = $region8
  $region5: #{combined_loss.1} parent=0 // loop_body
    %s13 = ssub.s32 %s8, 1
    %s14 = ssub.s32 %s8, 2
    %s24 = sadd.s32 1, %s17
    %p25 = scmp.ge.s32.totalorder %s24, 1
    %s26 = scalar_select %p25, 0, %s24
    %s27 = sadd.s32 1, %s16
    %s28 = scalar_select %p25, %s27, %s16
    %p29 = scmp.ge.s32.totalorder %s28, 2
    %s30 = scalar_select %p29, 0, %s28
    %s31 = sadd.s32 1, %s15
    %s32 = scalar_select %p29, %s31, %s15
    %p33 = scmp.ge.s32.totalorder %s32, 2
    %s34 = scalar_select %p33, 0, %s32
    %s35 = sadd.s32 %s15, %s17
    %s36 = sadd.s32 %s34, %s26
    %s37 = ssub.s32 %s16, %s30
    %s38 = ssub.s32 %s35, %s36
    %s39 = sor.u32 %s37, %s38
    %p40 = scmp.eq.s32.totalorder %s39, 0
    %s42 = sadd.s32 %s41, 1
    %s43 = scalar_select %p40, %s41, %s42
    %p46 = pneg %p40
    %p47 = scmp.eq.s32.totalorder %s8, 3
    %p48 = por %p46, %p47
    %p49 = scmp.ne.s32.totalorder %s41, %s44
    %p50 = scmp.eq.s32.totalorder %s8, 0
    %p51 = por %p49, %p50
    %p52 = scmp.ne.s32.totalorder %s41, %s44
    %p53 = scmp.eq.s32.totalorder %s13, 3
    %p54 = por %p52, %p53
    %p55 = scmp.ne.s32.totalorder %s44, %s45
    %p56 = scmp.eq.s32.totalorder %s13, 0
    %p57 = por %p55, %p56
    %p58 = scmp.ne.s32.totalorder %s44, %s45
    %p59 = scmp.eq.s32.totalorder %s14, 3
    %p60 = por %p58, %p59
    %p62 = scmp.ne.s32.totalorder %s45, %s61
    %p63 = scmp.eq.s32.totalorder %s14, 0
    %p64 = por %p62, %p63
    %s65 = sadd.s32 %s15, %s17
    %s66 = sadd.s32 %s34, %s26
    %s67 = ssub.s32 %s16, %s30
    %s68 = ssub.s32 %s65, %s66
    %s69 = sor.u32 %s67, %s68
    %p70 = scmp.eq.s32.totalorder %s69, 0
    %s72 = sadd.s32 %s71, 1
    %s73 = scalar_select %p70, %s71, %s72
    %p76 = pneg %p70
    %p77 = scmp.eq.s32.totalorder %s8, 3
    %p78 = por %p76, %p77
    %p79 = scmp.ne.s32.totalorder %s71, %s74
    %p80 = scmp.eq.s32.totalorder %s8, 0
    %p81 = por %p79, %p80
    %p82 = scmp.ne.s32.totalorder %s71, %s74
    %p83 = scmp.eq.s32.totalorder %s13, 3
    %p84 = por %p82, %p83
    %p85 = scmp.ne.s32.totalorder %s74, %s75
    %p86 = scmp.eq.s32.totalorder %s13, 0
    %p87 = por %p85, %p86
    %p88 = scmp.ne.s32.totalorder %s74, %s75
    %p89 = scmp.eq.s32.totalorder %s14, 3
    %p90 = por %p88, %p89
    %p92 = scmp.ne.s32.totalorder %s75, %s91
    %p93 = scmp.eq.s32.totalorder %s14, 0
    %p94 = por %p92, %p93
    %s95 = ssub.s32 %s15, %s34
    %p96 = scmp.eq.s32.totalorder %s95, 0
    %s98 = sadd.s32 %s97, 1
    %s99 = scalar_select %p96, %s97, %s98
    %p102 = pneg %p96
    %p103 = scmp.eq.s32.totalorder %s8, 3
    %p104 = por %p102, %p103
    %p105 = scmp.ne.s32.totalorder %s97, %s100
    %p106 = scmp.eq.s32.totalorder %s8, 0
    %p107 = por %p105, %p106
    %p108 = scmp.ne.s32.totalorder %s97, %s100
    %p109 = scmp.eq.s32.totalorder %s13, 3
    %p110 = por %p108, %p109
    %p111 = scmp.ne.s32.totalorder %s100, %s101
    %p112 = scmp.eq.s32.totalorder %s13, 0
    %p113 = por %p111, %p112
    %p114 = scmp.ne.s32.totalorder %s100, %s101
    %p115 = scmp.eq.s32.totalorder %s14, 3
    %p116 = por %p114, %p115
    %p118 = scmp.ne.s32.totalorder %s101, %s117
    %p119 = scmp.eq.s32.totalorder %s14, 0
    %p120 = por %p118, %p119
    %p121 = scmp.le.s32.totalorder 1, %s8
    %p122 = scmp.lt.s32.totalorder %s8, 5
    %p123 = pnand %p121, %p122
    %p124 = pneg %p123
    // Predicated region
    $region9: #{combined_loss.1} parent=5 // pred_check
      _
    $region10: #{combined_loss.1} parent=5 // pred_check_branch
      %126 = sbr.rel (%p123) target = $region12
    $region11: #{combined_loss.1} parent=5 // pred_region
      %s127 = ssub.s32 %s8, 1
    $region12: #{combined_loss.1} parent=5 // pred_fallthru
      _
    %p128 = scmp.lt.s32.totalorder %s8, 4
    // Predicated region
    $region13: #{combined_loss.1} parent=5 // pred_check
      %p129 = pneg %p128
    $region14: #{combined_loss.1} parent=5 // pred_check_branch
      %131 = sbr.rel (%p129) target = $region16
    $region15: #{combined_loss.1} parent=5 // pred_region
      // Predicated region
      $region17: #{combined_loss.1} parent=15 // pred_check
        %p132 = pneg %p51
      $region18: #{combined_loss.1} parent=15 // pred_check_branch
        %134 = sbr.rel (%p132) target = $region20
      $region19: #{combined_loss.1} parent=15 // pred_region
        %s135 = sadd.s32 %s15, %s17
        %p136 = scmp.lt.s32.totalorder %s16, 1
        %s137 = scalar_select %p136, %s16, 1
        %p138 = scmp.lt.s32.totalorder %s135, 1
        %s139 = scalar_select %p138, %s135, 1
        %s140 = smul.addr %s137, 2
        %s141 = sadd.s32 %s139, %s140
        %s142 = smul.addr %s141, 4
        %s143 = scalar_lea.vmem %s0, %s142
        %s144 = sadd.s32 %s15, %s17
      $region20: #{combined_loss.1} parent=15 // pred_fallthru
        _
      // Predicated region
      $region21: #{combined_loss.1} parent=15 // pred_check
        %p145 = pneg %p81
      $region22: #{combined_loss.1} parent=15 // pred_check_branch
        %147 = sbr.rel (%p145) target = $region24
      $region23: #{combined_loss.1} parent=15 // pred_region
        %s148 = sadd.s32 %s15, %s17
        %p149 = scmp.lt.s32.totalorder %s16, 1
        %s150 = scalar_select %p149, %s16, 1
        %p151 = scmp.lt.s32.totalorder %s148, 1
        %s152 = scalar_select %p151, %s148, 1
        %s153 = smul.addr %s150, 2
        %s154 = sadd.s32 %s152, %s153
        %s155 = scalar_lea.vmem %s1, %s154
        %s156 = sadd.s32 %s15, %s17
      $region24: #{combined_loss.1} parent=15 // pred_fallthru
        _
    $region16: #{combined_loss.1} parent=5 // pred_fallthru
      _
    %p157 = scmp.le.s32.totalorder 1, %s8
    %p158 = scmp.lt.s32.totalorder %s8, 5
    %p159 = pnand %p157, %p158
    %p160 = pneg %p159
    // Predicated region
    $region25: #{combined_loss.1} parent=5 // pred_check
      _
    $region26: #{combined_loss.1} parent=5 // pred_check_branch
      %162 = sbr.rel (%p159) target = $region28
    $region27: #{combined_loss.1} parent=5 // pred_region
      %s163 = ssub.s32 %s8, 1
      %s164 = sadd.s32 %s18, %s20
      %p165 = scmp.lt.s32.totalorder %s19, 1
      %s166 = scalar_select %p165, %s19, 1
      %p167 = scmp.lt.s32.totalorder %s164, 1
      %s168 = scalar_select %p167, %s164, 1
      %s169 = smul.addr %s166, 2
      %s170 = sadd.s32 %s168, %s169
      %s171 = smul.addr %s170, 4
      %s172 = scalar_lea.vmem %s0, %s171
      %p173 = pneg %p57
      %p174 = pneg %p54
      %s175 = sadd.s32 %s18, %s20
      %p176 = scmp.lt.s32.totalorder %s19, 1
      %s177 = scalar_select %p176, %s19, 1
      %p178 = scmp.lt.s32.totalorder %s175, 1
      %s179 = scalar_select %p178, %s175, 1
      %s180 = smul.addr %s177, 2
      %s181 = sadd.s32 %s179, %s180
      %s182 = scalar_lea.vmem %s1, %s181
      %p183 = pneg %p87
      %p184 = pneg %p84
      %p185 = pneg %p113
      %p186 = pneg %p110
      %p187 = scmp.lt.s32.totalorder %s18, 1
      %s188 = scalar_select %p187, %s18, 1
      %s189 = smul.addr %s188, 4
      %s190 = scalar_lea.vmem %s2, %s189
      %s191 = sadd.s32 %s18, %s20
      %p192 = scmp.lt.s32.totalorder %s19, 1
      %s193 = scalar_select %p192, %s19, 1
      %p194 = scmp.lt.s32.totalorder %s191, 1
      %s195 = scalar_select %p194, %s191, 1
      %s196 = smul.addr %s193, 2
      %s197 = sadd.s32 %s195, %s196
      %s198 = smul.addr %s197, 4
      %s199 = scalar_lea.vmem %s0, %s198
      %s200 = sadd.s32 %s18, %s20
      %s201 = sadd.s32 %s18, %s20
      %p202 = scmp.lt.s32.totalorder %s19, 1
      %s203 = scalar_select %p202, %s19, 1
      %p204 = scmp.lt.s32.totalorder %s201, 1
      %s205 = scalar_select %p204, %s201, 1
      %s206 = smul.addr %s203, 2
      %s207 = sadd.s32 %s205, %s206
      %s208 = scalar_lea.vmem %s1, %s207
      %s209 = sadd.s32 %s18, %s20
      %p210 = scmp.lt.s32.totalorder %s18, 1
      %s211 = scalar_select %p210, %s18, 1
      %s212 = smul.addr %s211, 4
      %s213 = scalar_lea.vmem %s2, %s212
      %p214 = scmp.eq.s32.totalorder %s19, 0
      %p215 = scmp.eq.s32.totalorder %s20, 0
      %p216 = pnand %p214, %p215
      %p217 = pneg %p216
      // Predicated region
      $region29: #{combined_loss.1} parent=27 // pred_check
        _
      $region30: #{combined_loss.1} parent=27 // pred_check_branch
        %219 = sbr.rel (%p216) target = $region32
      $region31: #{combined_loss.1} parent=27 // pred_region
        %220 = vst [vmem:[%s213] sm:$0xf] 0.0
      $region32: #{combined_loss.1} parent=27 // pred_fallthru
        _
      %v221 = vld [vmem:[%s199] sm:$0xf]
      %v222 = vld [vmem:[%s208] sm:$0x1]
      %v223 = vlaneseq
      %v224 = vshrl.u32 %v223, 7
      %v225 = vperm.slane %v222, 0
      %vm226 = vcmp.eq.s32.totalorder %v224, %v225
      %v227 = vsel %vm226, 1, 0
      %v228 = vcvt.s32.f32 %v227
      %v229 = vlaneseq
      %v230 = vand.u32 %v229, 127
      %s231 = sadd.s32 %s18, %s20
      %s232 = smul.u32 %s231, 128
      %v233 = vstv %s232
      %v234 = vadd.s32 %v233, %v230
      %vm235 = vcmp.lt.s32.totalorder %v234, 256
      %v236 = vsel %vm235, 1, 0
      %v237 = vcvt.s32.f32 %v236
      %vm238 = vcmask 1043456
      %v239 = vsel %vm238, %v221, -inf
      %v240 = vrot.slane %v239, 4
      %v241 = vmax.f32 %v239, %v240
      %v242 = vrot.slane %v241, 2
      %v243 = vmax.f32 %v241, %v242
      %v244 = vrot.slane %v243, 1
      %v245 = vmax.f32 %v243, %v244
      %v246 = vsub.f32 %v221, %v245
      %v247 = vmul.f32 %v246, 1.442695
      %v248 = vpow.pop %v247
      %v249 = vsel %vm238, %v248, 0.0
      %v250 = vrot.slane %v249, 4
      %v251 = vadd.f32 %v249, %v250
      %v252 = vrot.slane %v251, 2
      %v253 = vadd.f32 %v251, %v252
      %v254 = vrot.slane %v253, 1
      %v255 = vadd.f32 %v253, %v254
      %v256 = vrcp.pop %v255
      %v257 = vmul.f32 %v248, %v256
      %v258 = vmul.f32 %v221, %v228
      %v259 = vsel %vm238, %v258, 0.0
      %v260 = vrot.slane %v259, 4
      %v261 = vadd.f32 %v259, %v260
      %v262 = vrot.slane %v261, 2
      %v263 = vadd.f32 %v261, %v262
      %v264 = vrot.slane %v263, 1
      %v265 = vadd.f32 %v263, %v264
      %v266 = vsub.f32 %v265, %v245
      %v267 = vlog2.pop %v255
      %v268 = vmul.f32 %v267, 0.6931472
      %v269 = vsub.f32 %v266, %v268
      %v270 = vmul.f32 %v269, 1.442695
      %v271 = vpow.pop %v270
      %v272 = vsub.f32 1.0, %v271
      %v273 = vmul.f32 %v272, %v272
      %v274 = vsub.f32 0.0, %v273
      %v275 = vmul.f32 %v274, %v269
      %v276 = vmul.f32 %v228, %v237
      %v277 = vmul.f32 %v276, %v271
      %v278 = vsel %vm238, %v277, 0.0
      %279 = vadd.xlane.f32.xlu0 %v278
      %v280 = vpop.xlane.xlu0 %279
      %v281 = vmul.f32 %v257, %v237
      %v282 = vsel %vm238, %v281, 0.0
      %283 = vadd.xlane.f32.xlu0 %v282
      %v284 = vpop.xlane.xlu0 %283
      %v285 = vsel %vm238, %v276, 0.0
      %286 = vadd.xlane.f32.xlu0 %v285
      %v287 = vpop.xlane.xlu0 %286
      %v288 = vmul.f32 %v276, %v275
      %v289 = vsel %vm238, %v288, 0.0
      %290 = vadd.xlane.f32.xlu0 %v289
      %v291 = vpop.xlane.xlu0 %290
      %v292 = vld [vmem:[%s213] sm:$0xf]
      %v293 = vadd.f32 %v292, %v280
      %vm294 = vcmask 3072
      %295 = vst.msk [vmem:[%s213] sm:$0xf] %vm294, %v293
      %v296 = vld [vmem:[%s213] sm:$0xf]
      %v297 = vadd.f32 %v296, %v284
      %vm298 = vcmask 11272
      %299 = vst.msk [vmem:[%s213] sm:$0xf] %vm298, %v297
      %v300 = vld [vmem:[%s213] sm:$0xf]
      %v301 = vadd.f32 %v300, %v287
      %vm302 = vcmask 19472
      %303 = vst.msk [vmem:[%s213] sm:$0xf] %vm302, %v301
      %v304 = vld [vmem:[%s213] sm:$0xf]
      %v305 = vadd.f32 %v304, %v291
      %vm306 = vcmask 27672
      %307 = vst.msk [vmem:[%s213] sm:$0xf] %vm306, %v305
      %p308 = scmp.lt.s32.totalorder %s18, 1
      %s309 = scalar_select %p308, %s18, 1
      %s310 = smul.addr %s309, 4
      %s311 = scalar_lea.vmem %s2, %s310
      // Predicated region
      $region33: #{combined_loss.1} parent=27 // pred_check
        %p312 = pneg %p110
      $region34: #{combined_loss.1} parent=27 // pred_check_branch
        %314 = sbr.rel (%p312) target = $region36
      $region35: #{combined_loss.1} parent=27 // pred_region
        _
      $region36: #{combined_loss.1} parent=27 // pred_fallthru
        _
    $region28: #{combined_loss.1} parent=5 // pred_fallthru
      _
    %p315 = scmp.le.s32.totalorder 2, %s8
    // Predicated region
    $region37: #{combined_loss.1} parent=5 // pred_check
      %p316 = pneg %p315
    $region38: #{combined_loss.1} parent=5 // pred_check_branch
      %318 = sbr.rel (%p316) target = $region40
    $region39: #{combined_loss.1} parent=5 // pred_region
      %s319 = ssub.s32 %s8, 2
      // Predicated region
      $region41: #{combined_loss.1} parent=39 // pred_check
        %p320 = pneg %p116
      $region42: #{combined_loss.1} parent=39 // pred_check_branch
        %322 = sbr.rel (%p320) target = $region44
      $region43: #{combined_loss.1} parent=39 // pred_region
        %p323 = scmp.lt.s32.totalorder %s21, 1
        %s324 = scalar_select %p323, %s21, 1
        %s325 = smul.addr %s324, 4
        %s326 = scalar_lea.vmem %s2, %s325
      $region44: #{combined_loss.1} parent=39 // pred_fallthru
        _
    $region40: #{combined_loss.1} parent=5 // pred_fallthru
      _
  $region6: #{combined_loss.1} parent=0 // loop_footer
    %s12 = sadd.s32 1, %s8
  $region7: #{combined_loss.1} parent=0 // loop_footer_branch
    %7 = sbr.rel target = $region3
  $region8: #{combined_loss.1} parent=0 // loop_exit
    _

</llo_original>
